<compile_context>
chip_gen: v5e
topology: v5e:2x2
jax: 0.10.0
libtpu: 0.0.40
codegen_flags: <defaults>
</compile_context>

<pallas_src>
import jax
import jax.numpy as jnp
from jax.experimental import pallas as pl
from jax.experimental.pallas import tpu as pltpu


def se_kernel(x_ref, w1_ref, b1_ref, a_ref, w2_ref, b2_ref, o_ref):
    # x_ref / o_ref: (B_blk, C, HW) VMEM tile in the *native* NCHW layout:
    # C on sublanes, HW on the 128-lane axis.

    # ---- squeeze: global average pool = lane-axis reduce (XLU), f32 accum ----
    y = jnp.mean(x_ref[...], axis=2, dtype=jnp.float32)        # (Bb, C)

    # ---- excitation 1: Linear(C -> hidden) on the MXU, + PReLU ----
    h = jnp.dot(y, w1_ref[...], preferred_element_type=jnp.float32) + b1_ref[...]
    a = a_ref[0, 0]                                            # shared PReLU slope (SMEM scalar)
    h = jnp.where(h >= 0, h, a * h)                            # (Bb, hidden)

    # ---- excitation 2: Linear(hidden -> C) as `hidden` broadcast-FMAs ----
    # hidden is tiny (C // reduction); an MXU push/pop would be pure latency.
    w2 = w2_ref[...]                                           # (hidden, C)
    s = b2_ref[...]                                            # (1, C) -> broadcasts to (Bb, C)
    for j in range(w2.shape[0]):                               # static, unrolled
        s = s + h[:, j:j + 1] * w2[j:j + 1, :]
    s = jax.nn.sigmoid(s)                                      # (Bb, C)

    # ---- scale: gate broadcasts along the lane (HW) axis; multiply in the
    #      activation dtype (bf16 VALU on v6e/v7x; exact for f32) ----
    gate = s.astype(x_ref.dtype)                               # cast once
    o_ref[...] = x_ref[...] * gate[:, :, None]


def _pick_batch_block(B, HW, C, itemsize, vmem_limit_bytes):
    """Pick the per-grid-step batch block.

    Honest VMEM accounting: the pipeline holds 2x input + 2x output
    double-buffers in the activation dtype, plus small f32 temporaries and
    the (tiny) weights.  Budget ~75% of the scoped limit for the 4 big
    buffers and leave the rest as headroom.
    """
    per_batch_elem = HW * C * itemsize          # one batch row of ONE buffer
    big_buffers = 4                             # in (x2) + out (x2)
    budget = int(vmem_limit_bytes * 0.75)
    limit = max(1, budget // max(per_batch_elem * big_buffers, 1))
    b_blk = min(B, limit)                       # ragged last block is allowed
    # Keep >= 2 grid steps when possible so v7x megacore can shard the batch
    # axis across its two TensorCores (near-free on v5e/v6e).
    if B >= 2:
        b_blk = min(b_blk, pl.cdiv(B, 2))
    return max(1, b_blk)


def se_block(x, w1, b1, prelu_w, w2, b2):
    """SEBlock forward.

    x: (B, C, H, W).  w1: (C, hidden), w2: (hidden, C) stored input-major,
    i.e. w1 == fc1.weight.T and w2 == fc2.weight.T from the PyTorch module.
    """
    B, C, H, W = x.shape
    HW = H * W
    hidden = w1.shape[1]

    # Native-layout slab: (B, C, HW) is a contiguous (free) reshape of NCHW —
    # no HBM transpose passes in the wrapper.
    x3 = x.reshape(B, C, HW)
    b1_2d = b1.reshape(1, hidden).astype(jnp.float32)
    b2_2d = b2.reshape(1, C).astype(jnp.float32)
    a_2d = prelu_w.reshape(1, 1).astype(jnp.float32)

    vmem_limit = 32 * 1024 * 1024               # conservative: fits v7x's 64 MiB/TC
    b_blk = _pick_batch_block(B, HW, C, x.dtype.itemsize, vmem_limit)
    grid = (pl.cdiv(B, b_blk),)                 # ragged last block OK: padded
                                                # rows are computed but never stored

    out = pl.pallas_call(
        se_kernel,
        out_shape=jax.ShapeDtypeStruct((B, C, HW), x.dtype),
        grid=grid,
        in_specs=[
            pl.BlockSpec((b_blk, C, HW), lambda b: (b, 0, 0)),         # x tile (native NCHW)
            pl.BlockSpec((C, hidden), lambda b: (0, 0)),               # W1
            pl.BlockSpec((1, hidden), lambda b: (0, 0)),               # b1
            pl.BlockSpec(memory_space=pltpu.MemorySpace.SMEM),         # PReLU slope (scalar)
            pl.BlockSpec((hidden, C), lambda b: (0, 0)),               # W2
            pl.BlockSpec((1, C), lambda b: (0, 0)),                    # b2
        ],
        out_specs=pl.BlockSpec((b_blk, C, HW), lambda b: (b, 0, 0)),
        compiler_params=pltpu.CompilerParams(
            dimension_semantics=("parallel",),
            vmem_limit_bytes=vmem_limit,
        ),
    )(x3, w1, b1_2d, a_2d, w2, b2_2d)

    # Free metadata reshape back to NCHW.
    return out.reshape(B, C, H, W)


def se_block_ref(x, w1, b1, prelu_w, w2, b2):
    """Pure-JAX reference mirroring the PyTorch forward."""
    y = jnp.mean(x, axis=(2, 3))                               # (B, C)
    h = y @ w1 + b1
    a = prelu_w.reshape(())
    h = jnp.where(h >= 0, h, a * h)
    s = jax.nn.sigmoid(h @ w2 + b2)                            # (B, C)
    return x * s[:, :, None, None]


if __name__ == "__main__":
    # SEBlock(channel=128, reduction=16) -> hidden = 8, matching the chess
    # model's realistic SE configuration; spatial 8x8 board.
    B, C, H, W = 2, 128, 8, 8
    reduction = 16
    hidden = C // reduction

    key = jax.random.PRNGKey(0)
    kx, k1, kb1, k2, kb2 = jax.random.split(key, 5)

    x = jax.random.normal(kx, (B, C, H, W), dtype=jnp.float32)

    # Deterministic parameter init (uniform like nn.Linear); stored input-major
    # so the kernel computes y @ W directly (== PyTorch's y @ weight.T).
    lim1 = 1.0 / (C ** 0.5)
    w1 = jax.random.uniform(k1, (C, hidden), jnp.float32, -lim1, lim1)
    b1 = jax.random.uniform(kb1, (hidden,), jnp.float32, -lim1, lim1)
    lim2 = 1.0 / (hidden ** 0.5)
    w2 = jax.random.uniform(k2, (hidden, C), jnp.float32, -lim2, lim2)
    b2 = jax.random.uniform(kb2, (C,), jnp.float32, -lim2, lim2)
    prelu_w = jnp.array([0.25], dtype=jnp.float32)             # nn.PReLU() default

    out = jax.block_until_ready(se_block(x, w1, b1, prelu_w, w2, b2))
    ref = se_block_ref(x, w1, b1, prelu_w, w2, b2)

    assert out.shape == (B, C, H, W)
    assert jnp.allclose(out, ref, atol=1e-5, rtol=1e-5), "mismatch vs reference"
    print("KERNEL_OK")
</pallas_src>

<mosaic_0001>
module attributes {stable_mosaic.version = 11 : i64} {
  func.func @se_kernel(%arg0: i32, %arg1: memref<1x128x64xf32, #tpu.memory_space<vmem>>, %arg2: memref<128x8xf32, #tpu.memory_space<vmem>>, %arg3: memref<1x8xf32, #tpu.memory_space<vmem>>, %arg4: memref<1x1xf32, #tpu.memory_space<smem>>, %arg5: memref<8x128xf32, #tpu.memory_space<vmem>>, %arg6: memref<1x128xf32, #tpu.memory_space<vmem>>, %arg7: memref<1x128x64xf32, #tpu.memory_space<vmem>>) attributes {dimension_semantics = [#tpu.dimension_semantics<parallel>], iteration_bounds = array<i64: 2>, scalar_prefetch = 0 : i64, scratch_operands = 0 : i64, tpu.core_type = #tpu.core_type<tc>, window_params = [{transform_indices = @transform_0, window_bounds = array<i64: 1, 128, 64>}, {pipeline_mode = #tpu.pipeline_mode<synchronous>, transform_indices = @transform_1, window_bounds = array<i64: 128, 8>}, {pipeline_mode = #tpu.pipeline_mode<synchronous>, transform_indices = @transform_2, window_bounds = array<i64: 1, 8>}, {transform_indices = @transform_3, window_bounds = array<i64: 1, 1>}, {pipeline_mode = #tpu.pipeline_mode<synchronous>, transform_indices = @transform_4, window_bounds = array<i64: 8, 128>}, {pipeline_mode = #tpu.pipeline_mode<synchronous>, transform_indices = @transform_5, window_bounds = array<i64: 1, 128>}, {transform_indices = @transform_6, window_bounds = array<i64: 1, 128, 64>}]} {
    %c0 = arith.constant 0 : index
    %c0_0 = arith.constant 0 : index
    %c0_1 = arith.constant 0 : index
    %0 = vector.load %arg1[%c0, %c0_0, %c0_1] : memref<1x128x64xf32, #tpu.memory_space<vmem>>, vector<1x128x64xf32>
    %cst = arith.constant dense<0.000000e+00> : vector<1x128xf32>
    %1 = vector.multi_reduction <add>, %0, %cst [2] : vector<1x128x64xf32> to vector<1x128xf32>
    %cst_2 = arith.constant 6.400000e+01 : f32
    %2 = vector.broadcast %cst_2 : f32 to vector<1x128xf32>
    %3 = arith.divf %1, %2 : vector<1x128xf32>
    %c0_3 = arith.constant 0 : index
    %c0_4 = arith.constant 0 : index
    %4 = vector.load %arg2[%c0_3, %c0_4] : memref<128x8xf32, #tpu.memory_space<vmem>>, vector<128x8xf32>
    %cst_5 = arith.constant dense<0.000000e+00> : vector<1x8xf32>
    %5 = tpu.matmul %3, %4, %cst_5 {dimension_numbers = #tpu.dot_dimension_numbers<[1], [0], [0], [1], [0, 0, 1, 1], [], []>} : vector<1x128xf32>, vector<128x8xf32>, vector<1x8xf32> -> vector<1x8xf32>
    %c0_6 = arith.constant 0 : index
    %c0_7 = arith.constant 0 : index
    %6 = vector.load %arg3[%c0_6, %c0_7] : memref<1x8xf32, #tpu.memory_space<vmem>>, vector<1x8xf32>
    %7 = arith.addf %5, %6 : vector<1x8xf32>
    %c0_8 = arith.constant 0 : index
    %c0_9 = arith.constant 0 : index
    %8 = memref.load %arg4[%c0_8, %c0_9] : memref<1x1xf32, #tpu.memory_space<smem>>
    %cst_10 = arith.constant 0.000000e+00 : f32
    %9 = vector.broadcast %cst_10 : f32 to vector<1x8xf32>
    %10 = arith.cmpf oge, %7, %9 : vector<1x8xf32>
    %11 = vector.broadcast %8 : f32 to vector<1x8xf32>
    %12 = arith.mulf %11, %7 : vector<1x8xf32>
    %13 = arith.select %10, %7, %12 : vector<1x8xi1>, vector<1x8xf32>
    %c0_11 = arith.constant 0 : index
    %c0_12 = arith.constant 0 : index
    %14 = vector.load %arg5[%c0_11, %c0_12] : memref<8x128xf32, #tpu.memory_space<vmem>>, vector<8x128xf32>
    %c0_13 = arith.constant 0 : index
    %c0_14 = arith.constant 0 : index
    %15 = vector.load %arg6[%c0_13, %c0_14] : memref<1x128xf32, #tpu.memory_space<vmem>>, vector<1x128xf32>
    %16 = vector.extract_strided_slice %13 {offsets = [0, 0], sizes = [1, 1], strides = [1, 1]} : vector<1x8xf32> to vector<1x1xf32>
    %17 = vector.extract_strided_slice %14 {offsets = [0, 0], sizes = [1, 128], strides = [1, 1]} : vector<8x128xf32> to vector<1x128xf32>
    %18 = vector.broadcast %16 : vector<1x1xf32> to vector<1x128xf32>
    %19 = arith.mulf %18, %17 : vector<1x128xf32>
    %20 = arith.addf %15, %19 : vector<1x128xf32>
    %21 = vector.extract_strided_slice %13 {offsets = [0, 1], sizes = [1, 1], strides = [1, 1]} : vector<1x8xf32> to vector<1x1xf32>
    %22 = vector.extract_strided_slice %14 {offsets = [1, 0], sizes = [1, 128], strides = [1, 1]} : vector<8x128xf32> to vector<1x128xf32>
    %23 = vector.broadcast %21 : vector<1x1xf32> to vector<1x128xf32>
    %24 = arith.mulf %23, %22 : vector<1x128xf32>
    %25 = arith.addf %20, %24 : vector<1x128xf32>
    %26 = vector.extract_strided_slice %13 {offsets = [0, 2], sizes = [1, 1], strides = [1, 1]} : vector<1x8xf32> to vector<1x1xf32>
    %27 = vector.extract_strided_slice %14 {offsets = [2, 0], sizes = [1, 128], strides = [1, 1]} : vector<8x128xf32> to vector<1x128xf32>
    %28 = vector.broadcast %26 : vector<1x1xf32> to vector<1x128xf32>
    %29 = arith.mulf %28, %27 : vector<1x128xf32>
    %30 = arith.addf %25, %29 : vector<1x128xf32>
    %31 = vector.extract_strided_slice %13 {offsets = [0, 3], sizes = [1, 1], strides = [1, 1]} : vector<1x8xf32> to vector<1x1xf32>
    %32 = vector.extract_strided_slice %14 {offsets = [3, 0], sizes = [1, 128], strides = [1, 1]} : vector<8x128xf32> to vector<1x128xf32>
    %33 = vector.broadcast %31 : vector<1x1xf32> to vector<1x128xf32>
    %34 = arith.mulf %33, %32 : vector<1x128xf32>
    %35 = arith.addf %30, %34 : vector<1x128xf32>
    %36 = vector.extract_strided_slice %13 {offsets = [0, 4], sizes = [1, 1], strides = [1, 1]} : vector<1x8xf32> to vector<1x1xf32>
    %37 = vector.extract_strided_slice %14 {offsets = [4, 0], sizes = [1, 128], strides = [1, 1]} : vector<8x128xf32> to vector<1x128xf32>
    %38 = vector.broadcast %36 : vector<1x1xf32> to vector<1x128xf32>
    %39 = arith.mulf %38, %37 : vector<1x128xf32>
    %40 = arith.addf %35, %39 : vector<1x128xf32>
    %41 = vector.extract_strided_slice %13 {offsets = [0, 5], sizes = [1, 1], strides = [1, 1]} : vector<1x8xf32> to vector<1x1xf32>
    %42 = vector.extract_strided_slice %14 {offsets = [5, 0], sizes = [1, 128], strides = [1, 1]} : vector<8x128xf32> to vector<1x128xf32>
    %43 = vector.broadcast %41 : vector<1x1xf32> to vector<1x128xf32>
    %44 = arith.mulf %43, %42 : vector<1x128xf32>
    %45 = arith.addf %40, %44 : vector<1x128xf32>
    %46 = vector.extract_strided_slice %13 {offsets = [0, 6], sizes = [1, 1], strides = [1, 1]} : vector<1x8xf32> to vector<1x1xf32>
    %47 = vector.extract_strided_slice %14 {offsets = [6, 0], sizes = [1, 128], strides = [1, 1]} : vector<8x128xf32> to vector<1x128xf32>
    %48 = vector.broadcast %46 : vector<1x1xf32> to vector<1x128xf32>
    %49 = arith.mulf %48, %47 : vector<1x128xf32>
    %50 = arith.addf %45, %49 : vector<1x128xf32>
    %51 = vector.extract_strided_slice %13 {offsets = [0, 7], sizes = [1, 1], strides = [1, 1]} : vector<1x8xf32> to vector<1x1xf32>
    %52 = vector.extract_strided_slice %14 {offsets = [7, 0], sizes = [1, 128], strides = [1, 1]} : vector<8x128xf32> to vector<1x128xf32>
    %53 = vector.broadcast %51 : vector<1x1xf32> to vector<1x128xf32>
    %54 = arith.mulf %53, %52 : vector<1x128xf32>
    %55 = arith.addf %50, %54 : vector<1x128xf32>
    %56 = arith.negf %55 : vector<1x128xf32>
    %57 = math.exp %56 : vector<1x128xf32>
    %cst_15 = arith.constant 1.000000e+00 : f32
    %58 = vector.broadcast %cst_15 : f32 to vector<1x128xf32>
    %59 = arith.addf %58, %57 : vector<1x128xf32>
    %60 = arith.divf %58, %59 : vector<1x128xf32>
    %c0_16 = arith.constant 0 : index
    %c0_17 = arith.constant 0 : index
    %c0_18 = arith.constant 0 : index
    %61 = vector.load %arg1[%c0_16, %c0_17, %c0_18] : memref<1x128x64xf32, #tpu.memory_space<vmem>>, vector<1x128x64xf32>
    %62 = vector.shape_cast %60 : vector<1x128xf32> to vector<1x128x1xf32>
    %63 = vector.broadcast %62 : vector<1x128x1xf32> to vector<1x128x64xf32>
    %64 = arith.mulf %61, %63 : vector<1x128x64xf32>
    %c0_19 = arith.constant 0 : index
    %c0_20 = arith.constant 0 : index
    %c0_21 = arith.constant 0 : index
    %65 = vector.load %arg7[%c0_19, %c0_20, %c0_21] : memref<1x128x64xf32, #tpu.memory_space<vmem>>, vector<1x128x64xf32>
    tpu.vector_store %arg7[%c0_19, %c0_20, %c0_21], %64 {strides = array<i32>} : memref<1x128x64xf32, #tpu.memory_space<vmem>>, vector<1x128x64xf32>,
    return
  }
  func.func @transform_0(%arg0: i32) -> (i32, i32, i32) {
    %c0_i32 = arith.constant 0 : i32
    %c0_i32_0 = arith.constant 0 : i32
    %c0_i32_1 = arith.constant 0 : i32
    return %arg0, %c0_i32, %c0_i32_0 : i32, i32, i32
  }
  func.func @transform_1(%arg0: i32) -> (i32, i32) {
    %c0_i32 = arith.constant 0 : i32
    %c0_i32_0 = arith.constant 0 : i32
    %c0_i32_1 = arith.constant 0 : i32
    return %c0_i32, %c0_i32_0 : i32, i32
  }
  func.func @transform_2(%arg0: i32) -> (i32, i32) {
    %c0_i32 = arith.constant 0 : i32
    %c0_i32_0 = arith.constant 0 : i32
    %c0_i32_1 = arith.constant 0 : i32
    return %c0_i32, %c0_i32_0 : i32, i32
  }
  func.func @transform_3(%arg0: i32) -> (i32, i32) {
    %c0_i32 = arith.constant 0 : i32
    %c0_i32_0 = arith.constant 0 : i32
    %c0_i32_1 = arith.constant 0 : i32
    return %c0_i32, %c0_i32_0 : i32, i32
  }
  func.func @transform_4(%arg0: i32) -> (i32, i32) {
    %c0_i32 = arith.constant 0 : i32
    %c0_i32_0 = arith.constant 0 : i32
    %c0_i32_1 = arith.constant 0 : i32
    return %c0_i32, %c0_i32_0 : i32, i32
  }
  func.func @transform_5(%arg0: i32) -> (i32, i32) {
    %c0_i32 = arith.constant 0 : i32
    %c0_i32_0 = arith.constant 0 : i32
    %c0_i32_1 = arith.constant 0 : i32
    return %c0_i32, %c0_i32_0 : i32, i32
  }
  func.func @transform_6(%arg0: i32) -> (i32, i32, i32) {
    %c0_i32 = arith.constant 0 : i32
    %c0_i32_0 = arith.constant 0 : i32
    %c0_i32_1 = arith.constant 0 : i32
    return %arg0, %c0_i32, %c0_i32_0 : i32, i32, i32
  }
}

</mosaic_0001>

<llo_original>
// kernel: tpu_custom_call.1
$region0: #{tpu_custom_call.1}
  #allocation0 [shape = 'u32[]', space=smem, size = 0x4, offset = 0x4, fixed_abs, tag = 'smem constant byte address 0x4 - core index']
  #allocation1 [shape = 'u32[72,128]{1,0:T(1,128)}', space=vmem, size = 0x9000, scoped, tag = 'internal scratch']
  #allocation2 [shape = 'f32[1,1]{1,0:T(1,128)S(6)}', space=smem, size = 0x200, scoped, tag = 'scoped memory for tpu_custom_call.1']
  %s0 = inlined_call_operand.vmem [shape: f32[2,128,64], index: 0, kind: input, shape index: {}]
  %s1 = inlined_call_operand.vmem [shape: f32[128,8], index: 1, kind: input, shape index: {}]
  %s2 = inlined_call_operand.vmem [shape: f32[1,8], index: 2, kind: input, shape index: {}]
  %s3 = inlined_call_operand.<no memory space> [shape: f32[1,1], index: 3, kind: input, shape index: {}]
  %s4 = inlined_call_operand.vmem [shape: f32[8,128], index: 4, kind: input, shape index: {}]
  %s5 = inlined_call_operand.vmem [shape: f32[1,128], index: 5, kind: input, shape index: {}]
  %s6 = inlined_call_operand.vmem [shape: f32[2,128,64], index: 6, kind: output, shape index: {}]
  %s7 = sld [smem:[#allocation0]]
  $region57: #{tpu_custom_call.1} parent=0
    _
  %s9 = ssub.s32 1, %s7
  %s10 = scalar_select 0, %s9, %s7
  %11 = sst [smem:[#allocation2]] %s3
  loop: start=0, step=1, limit=4
  $region2: #{tpu_custom_call.1} parent=0 // loop_pre_header
    _
  $region3: #{tpu_custom_call.1} parent=0 // loop_header
    %s13 = sphi 0, %s17
    %p14 = scmp.ge.s32.totalorder %s13, 4
    %s23 = sphi 0, %s25
    %s26 = sphi 0, %s23
    %s27 = sphi 0, %s26
    %s43 = sphi 0, %s27
    %s47 = sphi 0, %s47
    %s49 = sphi 0, %s47
    %s50 = sphi 0, %s49
    %s64 = sphi 0, %s50
    %s68 = sphi 0, %s68
    %s70 = sphi 0, %s68
    %s71 = sphi 0, %s70
    %s85 = sphi 0, %s71
    %s89 = sphi 0, %s89
    %s91 = sphi 0, %s89
    %s92 = sphi 0, %s91
    %s106 = sphi 0, %s92
    %s110 = sphi 0, %s110
    %s112 = sphi 0, %s110
    %s113 = sphi 0, %s112
    %s127 = sphi 0, %s113
    %s131 = sphi 0, %s131
    %s133 = sphi 0, %s131
    %s134 = sphi 0, %s133
    %s148 = sphi 0, %s134
    %s154 = sphi 0, %s156
    %s157 = sphi 0, %s154
    %s158 = sphi 0, %s157
    %s174 = sphi 0, %s158
  $region4: #{tpu_custom_call.1} parent=0 // loop_header_branch
    %16 = sbr.rel (%p14) target = $region8
  $region5: #{tpu_custom_call.1} parent=0 // loop_body
    %s18 = ssub.s32 %s13, 1
    %s19 = ssub.s32 %s13, 2
    %s20 = sadd.s32 %s13, 1
    %s21 = ssub.s32 %s13, %s20
    %p22 = scmp.eq.s32.totalorder %s21, 0
    %s24 = sadd.s32 %s23, 1
    %s25 = scalar_select %p22, %s23, %s24
    %p28 = pneg %p22
    %p29 = scmp.eq.s32.totalorder %s13, 1
    %p30 = por %p28, %p29
    %p31 = scmp.ne.s32.totalorder %s23, %s26
    %p32 = scmp.eq.s32.totalorder %s13, 0
    %p33 = por %p31, %p32
    %p34 = scmp.ne.s32.totalorder %s23, %s26
    %p35 = scmp.eq.s32.totalorder %s18, 1
    %p36 = por %p34, %p35
    %p37 = scmp.ne.s32.totalorder %s26, %s27
    %p38 = scmp.eq.s32.totalorder %s18, 0
    %p39 = por %p37, %p38
    %p40 = scmp.ne.s32.totalorder %s26, %s27
    %p41 = scmp.eq.s32.totalorder %s19, 1
    %p42 = por %p40, %p41
    %p44 = scmp.ne.s32.totalorder %s27, %s43
    %p45 = scmp.eq.s32.totalorder %s19, 0
    %p46 = por %p44, %p45
    %s48 = sadd.s32 %s47, 1
    %p51 = scmp.eq.s32.totalorder %s13, 1
    %p52 = scmp.ne.s32.totalorder %s47, %s49
    %p53 = scmp.eq.s32.totalorder %s13, 0
    %p54 = por %p52, %p53
    %p55 = scmp.ne.s32.totalorder %s47, %s49
    %p56 = scmp.eq.s32.totalorder %s18, 1
    %p57 = por %p55, %p56
    %p58 = scmp.ne.s32.totalorder %s49, %s50
    %p59 = scmp.eq.s32.totalorder %s18, 0
    %p60 = por %p58, %p59
    %p61 = scmp.ne.s32.totalorder %s49, %s50
    %p62 = scmp.eq.s32.totalorder %s19, 1
    %p63 = por %p61, %p62
    %p65 = scmp.ne.s32.totalorder %s50, %s64
    %p66 = scmp.eq.s32.totalorder %s19, 0
    %p67 = por %p65, %p66
    %s69 = sadd.s32 %s68, 1
    %p72 = scmp.eq.s32.totalorder %s13, 1
    %p73 = scmp.ne.s32.totalorder %s68, %s70
    %p74 = scmp.eq.s32.totalorder %s13, 0
    %p75 = por %p73, %p74
    %p76 = scmp.ne.s32.totalorder %s68, %s70
    %p77 = scmp.eq.s32.totalorder %s18, 1
    %p78 = por %p76, %p77
    %p79 = scmp.ne.s32.totalorder %s70, %s71
    %p80 = scmp.eq.s32.totalorder %s18, 0
    %p81 = por %p79, %p80
    %p82 = scmp.ne.s32.totalorder %s70, %s71
    %p83 = scmp.eq.s32.totalorder %s19, 1
    %p84 = por %p82, %p83
    %p86 = scmp.ne.s32.totalorder %s71, %s85
    %p87 = scmp.eq.s32.totalorder %s19, 0
    %p88 = por %p86, %p87
    %s90 = sadd.s32 %s89, 1
    %p93 = scmp.eq.s32.totalorder %s13, 1
    %p94 = scmp.ne.s32.totalorder %s89, %s91
    %p95 = scmp.eq.s32.totalorder %s13, 0
    %p96 = por %p94, %p95
    %p97 = scmp.ne.s32.totalorder %s89, %s91
    %p98 = scmp.eq.s32.totalorder %s18, 1
    %p99 = por %p97, %p98
    %p100 = scmp.ne.s32.totalorder %s91, %s92
    %p101 = scmp.eq.s32.totalorder %s18, 0
    %p102 = por %p100, %p101
    %p103 = scmp.ne.s32.totalorder %s91, %s92
    %p104 = scmp.eq.s32.totalorder %s19, 1
    %p105 = por %p103, %p104
    %p107 = scmp.ne.s32.totalorder %s92, %s106
    %p108 = scmp.eq.s32.totalorder %s19, 0
    %p109 = por %p107, %p108
    %s111 = sadd.s32 %s110, 1
    %p114 = scmp.eq.s32.totalorder %s13, 1
    %p115 = scmp.ne.s32.totalorder %s110, %s112
    %p116 = scmp.eq.s32.totalorder %s13, 0
    %p117 = por %p115, %p116
    %p118 = scmp.ne.s32.totalorder %s110, %s112
    %p119 = scmp.eq.s32.totalorder %s18, 1
    %p120 = por %p118, %p119
    %p121 = scmp.ne.s32.totalorder %s112, %s113
    %p122 = scmp.eq.s32.totalorder %s18, 0
    %p123 = por %p121, %p122
    %p124 = scmp.ne.s32.totalorder %s112, %s113
    %p125 = scmp.eq.s32.totalorder %s19, 1
    %p126 = por %p124, %p125
    %p128 = scmp.ne.s32.totalorder %s113, %s127
    %p129 = scmp.eq.s32.totalorder %s19, 0
    %p130 = por %p128, %p129
    %s132 = sadd.s32 %s131, 1
    %p135 = scmp.eq.s32.totalorder %s13, 1
    %p136 = scmp.ne.s32.totalorder %s131, %s133
    %p137 = scmp.eq.s32.totalorder %s13, 0
    %p138 = por %p136, %p137
    %p139 = scmp.ne.s32.totalorder %s131, %s133
    %p140 = scmp.eq.s32.totalorder %s18, 1
    %p141 = por %p139, %p140
    %p142 = scmp.ne.s32.totalorder %s133, %s134
    %p143 = scmp.eq.s32.totalorder %s18, 0
    %p144 = por %p142, %p143
    %p145 = scmp.ne.s32.totalorder %s133, %s134
    %p146 = scmp.eq.s32.totalorder %s19, 1
    %p147 = por %p145, %p146
    %p149 = scmp.ne.s32.totalorder %s134, %s148
    %p150 = scmp.eq.s32.totalorder %s19, 0
    %p151 = por %p149, %p150
    %s152 = ssub.s32 %s13, %s20
    %p153 = scmp.eq.s32.totalorder %s152, 0
    %s155 = sadd.s32 %s154, 1
    %s156 = scalar_select %p153, %s154, %s155
    %p159 = pneg %p153
    %p160 = scmp.eq.s32.totalorder %s13, 1
    %p161 = por %p159, %p160
    %p162 = scmp.ne.s32.totalorder %s154, %s157
    %p163 = scmp.eq.s32.totalorder %s13, 0
    %p164 = por %p162, %p163
    %p165 = scmp.ne.s32.totalorder %s154, %s157
    %p166 = scmp.eq.s32.totalorder %s18, 1
    %p167 = por %p165, %p166
    %p168 = scmp.ne.s32.totalorder %s157, %s158
    %p169 = scmp.eq.s32.totalorder %s18, 0
    %p170 = por %p168, %p169
    %p171 = scmp.ne.s32.totalorder %s157, %s158
    %p172 = scmp.eq.s32.totalorder %s19, 1
    %p173 = por %p171, %p172
    %p175 = scmp.ne.s32.totalorder %s158, %s174
    %p176 = scmp.eq.s32.totalorder %s19, 0
    %p177 = por %p175, %p176
    %p178 = scmp.le.s32.totalorder 1, %s13
    %p179 = scmp.lt.s32.totalorder %s13, 3
    %p180 = pnand %p178, %p179
    %p181 = pneg %p180
    // Predicated region
    $region9: #{tpu_custom_call.1} parent=5 // pred_check
      _
    $region10: #{tpu_custom_call.1} parent=5 // pred_check_branch
      %183 = sbr.rel (%p180) target = $region12
    $region11: #{tpu_custom_call.1} parent=5 // pred_region
      %s184 = ssub.s32 %s13, 1
      // Predicated region
      $region13: #{tpu_custom_call.1} parent=11 // pred_check
        %p185 = pneg %p60
      $region14: #{tpu_custom_call.1} parent=11 // pred_check_branch
        %187 = sbr.rel (%p185) target = $region16
      $region15: #{tpu_custom_call.1} parent=11 // pred_region
        _
      $region16: #{tpu_custom_call.1} parent=11 // pred_fallthru
        _
      // Predicated region
      $region17: #{tpu_custom_call.1} parent=11 // pred_check
        %p188 = pneg %p81
      $region18: #{tpu_custom_call.1} parent=11 // pred_check_branch
        %190 = sbr.rel (%p188) target = $region20
      $region19: #{tpu_custom_call.1} parent=11 // pred_region
        _
      $region20: #{tpu_custom_call.1} parent=11 // pred_fallthru
        _
      // Predicated region
      $region21: #{tpu_custom_call.1} parent=11 // pred_check
        %p191 = pneg %p102
      $region22: #{tpu_custom_call.1} parent=11 // pred_check_branch
        %193 = sbr.rel (%p191) target = $region24
      $region23: #{tpu_custom_call.1} parent=11 // pred_region
        _
      $region24: #{tpu_custom_call.1} parent=11 // pred_fallthru
        _
      // Predicated region
      $region25: #{tpu_custom_call.1} parent=11 // pred_check
        %p194 = pneg %p123
      $region26: #{tpu_custom_call.1} parent=11 // pred_check_branch
        %196 = sbr.rel (%p194) target = $region28
      $region27: #{tpu_custom_call.1} parent=11 // pred_region
        _
      $region28: #{tpu_custom_call.1} parent=11 // pred_fallthru
        _
      // Predicated region
      $region29: #{tpu_custom_call.1} parent=11 // pred_check
        %p197 = pneg %p144
      $region30: #{tpu_custom_call.1} parent=11 // pred_check_branch
        %199 = sbr.rel (%p197) target = $region32
      $region31: #{tpu_custom_call.1} parent=11 // pred_region
        _
      $region32: #{tpu_custom_call.1} parent=11 // pred_fallthru
        _
    $region12: #{tpu_custom_call.1} parent=5 // pred_fallthru
      _
    %p200 = scmp.lt.s32.totalorder %s13, 2
    // Predicated region
    $region33: #{tpu_custom_call.1} parent=5 // pred_check
      %p201 = pneg %p200
    $region34: #{tpu_custom_call.1} parent=5 // pred_check_branch
      %203 = sbr.rel (%p201) target = $region36
    $region35: #{tpu_custom_call.1} parent=5 // pred_region
      // Predicated region
      $region37: #{tpu_custom_call.1} parent=35 // pred_check
        %p204 = pneg %p33
      $region38: #{tpu_custom_call.1} parent=35 // pred_check_branch
        %206 = sbr.rel (%p204) target = $region40
      $region39: #{tpu_custom_call.1} parent=35 // pred_region
        %p207 = scmp.lt.s32.totalorder %s13, 1
        %s208 = scalar_select %p207, %s13, 1
        %s209 = smul.addr %s208, 16
        %s210 = smul.addr %s209, 8
        %s211 = scalar_lea.vmem %s0, %s210
      $region40: #{tpu_custom_call.1} parent=35 // pred_fallthru
        _
    $region36: #{tpu_custom_call.1} parent=5 // pred_fallthru
      _
    %p212 = scmp.le.s32.totalorder 1, %s13
    %p213 = scmp.lt.s32.totalorder %s13, 3
    %p214 = pnand %p212, %p213
    %p215 = pneg %p214
    // Predicated region
    $region41: #{tpu_custom_call.1} parent=5 // pred_check
      _
    $region42: #{tpu_custom_call.1} parent=5 // pred_check_branch
      %217 = sbr.rel (%p214) target = $region44
    $region43: #{tpu_custom_call.1} parent=5 // pred_region
      %s218 = ssub.s32 %s13, 1
      %p219 = scmp.lt.s32.totalorder %s18, 1
      %s220 = scalar_select %p219, %s18, 1
      %s221 = smul.addr %s220, 16
      %s222 = smul.addr %s221, 8
      %s223 = scalar_lea.vmem %s0, %s222
      %p224 = pneg %p39
      %p225 = pneg %p36
      %p226 = pneg %p60
      %p227 = pneg %p57
      %p228 = pneg %p81
      %p229 = pneg %p78
      %p230 = pneg %p102
      %p231 = pneg %p99
      %p232 = pneg %p123
      %p233 = pneg %p120
      %p234 = pneg %p144
      %p235 = pneg %p141
      %p236 = pneg %p170
      %p237 = pneg %p167
      %p238 = scmp.lt.s32.totalorder %s18, 1
      %s239 = scalar_select %p238, %s18, 1
      %s240 = smul.addr %s239, 16
      %s241 = smul.addr %s240, 8
      %s242 = scalar_lea.vmem %s6, %s241
      %p243 = scmp.lt.s32.totalorder %s18, 1
      %s244 = scalar_select %p243, %s18, 1
      %s245 = smul.addr %s244, 16
      %s246 = smul.addr %s245, 8
      %s247 = scalar_lea.vmem %s0, %s246
      %p248 = scmp.lt.s32.totalorder %s18, 1
      %s249 = scalar_select %p248, %s18, 1
      %s250 = smul.addr %s249, 16
      %s251 = smul.addr %s250, 8
      %s252 = scalar_lea.vmem %s6, %s251
      %v253 = vld [vmem:[%s247] sm:$0xff]
      %v254 = vld [vmem:[%s247 + $0x8] sm:$0xff]
      %v255 = vld [vmem:[%s247 + $0x10] sm:$0xff]
      %v256 = vld [vmem:[%s247 + $0x18] sm:$0xff]
      %v257 = vld [vmem:[%s247 + $0x20] sm:$0xff]
      %v258 = vld [vmem:[%s247 + $0x28] sm:$0xff]
      %v259 = vld [vmem:[%s247 + $0x30] sm:$0xff]
      %v260 = vld [vmem:[%s247 + $0x38] sm:$0xff]
      %v261 = vld [vmem:[%s247 + $0x40] sm:$0xff]
      %v262 = vld [vmem:[%s247 + $0x48] sm:$0xff]
      %v263 = vld [vmem:[%s247 + $0x50] sm:$0xff]
      %v264 = vld [vmem:[%s247 + $0x58] sm:$0xff]
      %v265 = vld [vmem:[%s247 + $0x60] sm:$0xff]
      %v266 = vld [vmem:[%s247 + $0x68] sm:$0xff]
      %v267 = vld [vmem:[%s247 + $0x70] sm:$0xff]
      %v268 = vld [vmem:[%s247 + $0x78] sm:$0xff]
      %vm269 = vcmask 523264
      %v270 = vsel %vm269, %v253, 0.0
      %271 = vadd.xlane.f32.xlu0 %v270
      %v272 = vpop.xlane.xlu0 %271
      %v273 = vsel %vm269, %v254, 0.0
      %274 = vadd.xlane.f32.xlu0 %v273
      %v275 = vpop.xlane.xlu0 %274
      %v276 = vsel %vm269, %v255, 0.0
      %277 = vadd.xlane.f32.xlu0 %v276
      %v278 = vpop.xlane.xlu0 %277
      %v279 = vsel %vm269, %v256, 0.0
      %280 = vadd.xlane.f32.xlu0 %v279
      %v281 = vpop.xlane.xlu0 %280
      %v282 = vsel %vm269, %v257, 0.0
      %283 = vadd.xlane.f32.xlu0 %v282
      %v284 = vpop.xlane.xlu0 %283
      %v285 = vsel %vm269, %v258, 0.0
      %286 = vadd.xlane.f32.xlu0 %v285
      %v287 = vpop.xlane.xlu0 %286
      %v288 = vsel %vm269, %v259, 0.0
      %289 = vadd.xlane.f32.xlu0 %v288
      %v290 = vpop.xlane.xlu0 %289
      %v291 = vsel %vm269, %v260, 0.0
      %292 = vadd.xlane.f32.xlu0 %v291
      %v293 = vpop.xlane.xlu0 %292
      %v294 = vsel %vm269, %v261, 0.0
      %295 = vadd.xlane.f32.xlu0 %v294
      %v296 = vpop.xlane.xlu0 %295
      %v297 = vsel %vm269, %v262, 0.0
      %298 = vadd.xlane.f32.xlu0 %v297
      %v299 = vpop.xlane.xlu0 %298
      %v300 = vsel %vm269, %v263, 0.0
      %301 = vadd.xlane.f32.xlu0 %v300
      %v302 = vpop.xlane.xlu0 %301
      %v303 = vsel %vm269, %v264, 0.0
      %304 = vadd.xlane.f32.xlu0 %v303
      %v305 = vpop.xlane.xlu0 %304
      %v306 = vsel %vm269, %v265, 0.0
      %307 = vadd.xlane.f32.xlu0 %v306
      %v308 = vpop.xlane.xlu0 %307
      %v309 = vsel %vm269, %v266, 0.0
      %310 = vadd.xlane.f32.xlu0 %v309
      %v311 = vpop.xlane.xlu0 %310
      %v312 = vsel %vm269, %v267, 0.0
      %313 = vadd.xlane.f32.xlu0 %v312
      %v314 = vpop.xlane.xlu0 %313
      %v315 = vsel %vm269, %v268, 0.0
      %316 = vadd.xlane.f32.xlu0 %v315
      %v317 = vpop.xlane.xlu0 %316
      %v318 = vrcp.pop 64.0
      %v319 = vmul.f32 64.0, %v318
      %v320 = vsub.f32 1.0, %v319
      %v321 = vmul.f32 %v318, %v320
      %v322 = vadd.f32 %v318, %v321
      %vm323 = vweird.f32 %v318
      %v324 = vsel %vm323, %v318, %v322
      %v325 = vmul.f32 %v272, %v324
      %v326 = vmul.f32 %v275, %v324
      %v327 = vmul.f32 %v278, %v324
      %v328 = vmul.f32 %v281, %v324
      %v329 = vmul.f32 %v284, %v324
      %v330 = vmul.f32 %v287, %v324
      %v331 = vmul.f32 %v290, %v324
      %v332 = vmul.f32 %v293, %v324
      %v333 = vmul.f32 %v296, %v324
      %v334 = vmul.f32 %v299, %v324
      %v335 = vmul.f32 %v302, %v324
      %v336 = vmul.f32 %v305, %v324
      %v337 = vmul.f32 %v308, %v324
      %v338 = vmul.f32 %v311, %v324
      %v339 = vmul.f32 %v314, %v324
      %v340 = vmul.f32 %v317, %v324
      %v341 = vld [vmem:[%s1] sm:$0xff]
      %v342 = vld [vmem:[%s1 + $0x8] sm:$0xff]
      %v343 = vld [vmem:[%s1 + $0x10] sm:$0xff]
      %v344 = vld [vmem:[%s1 + $0x18] sm:$0xff]
      %v345 = vld [vmem:[%s1 + $0x20] sm:$0xff]
      %v346 = vld [vmem:[%s1 + $0x28] sm:$0xff]
      %v347 = vld [vmem:[%s1 + $0x30] sm:$0xff]
      %v348 = vld [vmem:[%s1 + $0x38] sm:$0xff]
      %v349 = vld [vmem:[%s1 + $0x40] sm:$0xff]
      %v350 = vld [vmem:[%s1 + $0x48] sm:$0xff]
      %v351 = vld [vmem:[%s1 + $0x50] sm:$0xff]
      %v352 = vld [vmem:[%s1 + $0x58] sm:$0xff]
      %v353 = vld [vmem:[%s1 + $0x60] sm:$0xff]
      %v354 = vld [vmem:[%s1 + $0x68] sm:$0xff]
      %v355 = vld [vmem:[%s1 + $0x70] sm:$0xff]
      %v356 = vld [vmem:[%s1 + $0x78] sm:$0xff]
      %v357 = vld [vmem:[%s2] sm:$0x1]
      %v374 = vlaneseq
      %v375 = vand.u32 %v374, 127
      %v376 = vperm.slane %v325, %v375
      %v377 = vadd.s32 %v375, 4294967288
      %v378 = vperm.slane %v326, %v377
      %vm379 = vcmask 130112
      %v380 = vsel %vm379, %v378, %v376
      %v381 = vadd.s32 %v375, 4294967280
      %v382 = vperm.slane %v327, %v381
      %vm383 = vcmask 195712
      %v384 = vsel %vm383, %v382, %v380
      %v385 = vadd.s32 %v375, 4294967272
      %v386 = vperm.slane %v328, %v385
      %vm387 = vcmask 261312
      %v388 = vsel %vm387, %v386, %v384
      %v389 = vadd.s32 %v375, 4294967264
      %v390 = vperm.slane %v329, %v389
      %vm391 = vcmask 326912
      %v392 = vsel %vm391, %v390, %v388
      %v393 = vadd.s32 %v375, 4294967256
      %v394 = vperm.slane %v330, %v393
      %vm395 = vcmask 392512
      %v396 = vsel %vm395, %v394, %v392
      %v397 = vadd.s32 %v375, 4294967248
      %v398 = vperm.slane %v331, %v397
      %vm399 = vcmask 458112
      %v400 = vsel %vm399, %v398, %v396
      %v401 = vadd.s32 %v375, 4294967240
      %v402 = vperm.slane %v332, %v401
      %vm403 = vcmask 523712
      %v404 = vsel %vm403, %v402, %v400
      %v405 = vadd.s32 %v375, 4294967232
      %v406 = vperm.slane %v333, %v405
      %vm407 = vcmask 589312
      %v408 = vsel %vm407, %v406, %v404
      %v409 = vadd.s32 %v375, 4294967224
      %v410 = vperm.slane %v334, %v409
      %vm411 = vcmask 654912
      %v412 = vsel %vm411, %v410, %v408
      %v413 = vadd.s32 %v375, 4294967216
      %v414 = vperm.slane %v335, %v413
      %vm415 = vcmask 720512
      %v416 = vsel %vm415, %v414, %v412
      %v417 = vadd.s32 %v375, 4294967208
      %v418 = vperm.slane %v336, %v417
      %vm419 = vcmask 786112
      %v420 = vsel %vm419, %v418, %v416
      %v421 = vadd.s32 %v375, 4294967200
      %v422 = vperm.slane %v337, %v421
      %vm423 = vcmask 851712
      %v424 = vsel %vm423, %v422, %v420
      %v425 = vadd.s32 %v375, 4294967192
      %v426 = vperm.slane %v338, %v425
      %vm427 = vcmask 917312
      %v428 = vsel %vm427, %v426, %v424
      %v429 = vadd.s32 %v375, 4294967184
      %v430 = vperm.slane %v339, %v429
      %vm431 = vcmask 982912
      %v432 = vsel %vm431, %v430, %v428
      %v433 = vadd.s32 %v375, 4294967176
      %v434 = vperm.slane %v340, %v433
      %vm435 = vcmask 1048512
      %v436 = vsel %vm435, %v434, %v432
      %438 = vmatpush.msra.mxu0 %v356
      %439 = vmatpush.msra.mxu0 %v355
      %440 = vmatpush.msra.mxu0 %v354
      %441 = vmatpush.msra.mxu0 %v353
      %442 = vmatpush.msra.mxu0 %v352
      %443 = vmatpush.msra.mxu0 %v351
      %444 = vmatpush.msra.mxu0 %v350
      %445 = vmatpush.msra.mxu0 %v349
      %446 = vmatpush.msra.mxu0 %v348
      %447 = vmatpush.msra.mxu0 %v347
      %448 = vmatpush.msra.mxu0 %v346
      %449 = vmatpush.msra.mxu0 %v345
      %450 = vmatpush.msra.mxu0 %v344
      %451 = vmatpush.msra.mxu0 %v343
      %452 = vmatpush.msra.mxu0 %v342
      %453 = vmatpush.msra.mxu0 %v341
      %454 = vmatmul.f32.gmra.mxu0 %v436
      %v455 = vpop.f32.mrf.mxu0
      %v456 = vadd.f32 %v357, %v455
      %457 = vdwg.mxu0
      %s458 = sld [smem:[#allocation2]]
      %vm459 = vcmp.ge.f32.partialorder %v456, 0.0
      %v460 = vstv %s458
      %v461 = vmul.f32 %v460, %v456
      %v462 = vsel %vm459, %v456, %v461
      %v463 = vld [vmem:[%s4] sm:$0xff]
      %v464 = vld [vmem:[%s5] sm:$0x1]
      %466 = vset.pattern.permute.xlu0 0
      %467 = vperm.xlu0 %466, %v462
      %v468 = vpop.permute.xlu0 %467
      %v470 = vmul.f32 %v468, %v463
      %v471 = vadd.f32 %v464, %v470
      %472 = vset.pattern.permute.xlu0 1
      %473 = vperm.xlu0 %472, %v462
      %v474 = vpop.permute.xlu0 %473
      %v477 = vrot.slane %v463, 1
      %v479 = vmul.f32 %v474, %v477
      %v480 = vadd.f32 %v471, %v479
      %481 = vset.pattern.permute.xlu0 2
      %482 = vperm.xlu0 %481, %v462
      %v483 = vpop.permute.xlu0 %482
      %v485 = vrot.slane %v463, 2
      %v487 = vmul.f32 %v483, %v485
      %v488 = vadd.f32 %v480, %v487
      %489 = vset.pattern.permute.xlu0 3
      %490 = vperm.xlu0 %489, %v462
      %v491 = vpop.permute.xlu0 %490
      %v493 = vrot.slane %v463, 3
      %v495 = vmul.f32 %v491, %v493
      %v496 = vadd.f32 %v488, %v495
      %497 = vset.pattern.permute.xlu0 4
      %498 = vperm.xlu0 %497, %v462
      %v499 = vpop.permute.xlu0 %498
      %v501 = vrot.slane %v463, 4
      %v503 = vmul.f32 %v499, %v501
      %v504 = vadd.f32 %v496, %v503
      %505 = vset.pattern.permute.xlu0 5
      %506 = vperm.xlu0 %505, %v462
      %v507 = vpop.permute.xlu0 %506
      %v509 = vrot.slane %v463, 5
      %v511 = vmul.f32 %v507, %v509
      %v512 = vadd.f32 %v504, %v511
      %513 = vset.pattern.permute.xlu0 6
      %514 = vperm.xlu0 %513, %v462
      %v515 = vpop.permute.xlu0 %514
      %v517 = vrot.slane %v463, 6
      %v519 = vmul.f32 %v515, %v517
      %v520 = vadd.f32 %v512, %v519
      %521 = vset.pattern.permute.xlu0 7
      %522 = vperm.xlu0 %521, %v462
      %v523 = vpop.permute.xlu0 %522
      %v525 = vrot.slane %v463, 7
      %v527 = vmul.f32 %v523, %v525
      %v528 = vadd.f32 %v520, %v527
      %v529 = vxor.u32 %v528, 2147483648
      %v530 = vmul.f32 %v529, 1.442695
      %v531 = vpow.pop %v530
      %v532 = vadd.f32 %v531, 1.0
      %v533 = vrcp.pop %v532
      %v534 = vmul.f32 %v532, %v533
      %v535 = vsub.f32 1.0, %v534
      %v536 = vmul.f32 %v533, %v535
      %v537 = vadd.f32 %v533, %v536
      %vm538 = vweird.f32 %v532
      %vm539 = vweird.f32 %v533
      %vm540 = vmor %vm538, %vm539
      %v541 = vsel %vm540, %v533, %v537
      %v542 = vand.u32 2147483647, %v532
      %vm543 = vcmp.eq.f32.partialorder %v542, 8.507059e+37
      %v544 = vand.u32 %v532, 2147483648
      %v545 = vor.u32 1.1754944e-38, %v544
      %v546 = vsel %vm543, %v545, %v541
      %v547 = vmul.f32 1.0, %v546
      %v548 = vperm.slane %v547, 0
      %v549 = vlaneseq
      %v550 = vshrl.u32 %v549, 7
      %552 = vset.pattern.permute.xlu0 %v550
      %553 = vperm.xlu0 %552, %v548
      %v554 = vpop.permute.xlu0 %553
      %v555 = vlaneseq
      %v556 = vshrl.u32 %v555, 7
      %v557 = vadd.s32 %v556, 8
      %558 = vset.pattern.permute.xlu0 %v557
      %559 = vperm.xlu0 %558, %v548
      %v560 = vpop.permute.xlu0 %559
      %v561 = vlaneseq
      %v562 = vshrl.u32 %v561, 7
      %v563 = vadd.s32 %v562, 16
      %564 = vset.pattern.permute.xlu0 %v563
      %565 = vperm.xlu0 %564, %v548
      %v566 = vpop.permute.xlu0 %565
      %v567 = vlaneseq
      %v568 = vshrl.u32 %v567, 7
      %v569 = vadd.s32 %v568, 24
      %570 = vset.pattern.permute.xlu0 %v569
      %571 = vperm.xlu0 %570, %v548
      %v572 = vpop.permute.xlu0 %571
      %v573 = vlaneseq
      %v574 = vshrl.u32 %v573, 7
      %v575 = vadd.s32 %v574, 32
      %576 = vset.pattern.permute.xlu0 %v575
      %577 = vperm.xlu0 %576, %v548
      %v578 = vpop.permute.xlu0 %577
      %v579 = vlaneseq
      %v580 = vshrl.u32 %v579, 7
      %v581 = vadd.s32 %v580, 40
      %582 = vset.pattern.permute.xlu0 %v581
      %583 = vperm.xlu0 %582, %v548
      %v584 = vpop.permute.xlu0 %583
      %v585 = vlaneseq
      %v586 = vshrl.u32 %v585, 7
      %v587 = vadd.s32 %v586, 48
      %588 = vset.pattern.permute.xlu0 %v587
      %589 = vperm.xlu0 %588, %v548
      %v590 = vpop.permute.xlu0 %589
      %v591 = vlaneseq
      %v592 = vshrl.u32 %v591, 7
      %v593 = vadd.s32 %v592, 56
      %594 = vset.pattern.permute.xlu0 %v593
      %595 = vperm.xlu0 %594, %v548
      %v596 = vpop.permute.xlu0 %595
      %v597 = vlaneseq
      %v598 = vshrl.u32 %v597, 7
      %v599 = vadd.s32 %v598, 64
      %600 = vset.pattern.permute.xlu0 %v599
      %601 = vperm.xlu0 %600, %v548
      %v602 = vpop.permute.xlu0 %601
      %v603 = vlaneseq
      %v604 = vshrl.u32 %v603, 7
      %v605 = vadd.s32 %v604, 72
      %606 = vset.pattern.permute.xlu0 %v605
      %607 = vperm.xlu0 %606, %v548
      %v608 = vpop.permute.xlu0 %607
      %v609 = vlaneseq
      %v610 = vshrl.u32 %v609, 7
      %v611 = vadd.s32 %v610, 80
      %612 = vset.pattern.permute.xlu0 %v611
      %613 = vperm.xlu0 %612, %v548
      %v614 = vpop.permute.xlu0 %613
      %v615 = vlaneseq
      %v616 = vshrl.u32 %v615, 7
      %v617 = vadd.s32 %v616, 88
      %618 = vset.pattern.permute.xlu0 %v617
      %619 = vperm.xlu0 %618, %v548
      %v620 = vpop.permute.xlu0 %619
      %v621 = vlaneseq
      %v622 = vshrl.u32 %v621, 7
      %v623 = vadd.s32 %v622, 96
      %624 = vset.pattern.permute.xlu0 %v623
      %625 = vperm.xlu0 %624, %v548
      %v626 = vpop.permute.xlu0 %625
      %v627 = vlaneseq
      %v628 = vshrl.u32 %v627, 7
      %v629 = vadd.s32 %v628, 104
      %630 = vset.pattern.permute.xlu0 %v629
      %631 = vperm.xlu0 %630, %v548
      %v632 = vpop.permute.xlu0 %631
      %v633 = vlaneseq
      %v634 = vshrl.u32 %v633, 7
      %v635 = vadd.s32 %v634, 112
      %636 = vset.pattern.permute.xlu0 %v635
      %637 = vperm.xlu0 %636, %v548
      %v638 = vpop.permute.xlu0 %637
      %v639 = vlaneseq
      %v640 = vshrl.u32 %v639, 7
      %v641 = vadd.s32 %v640, 120
      %642 = vset.pattern.permute.xlu0 %v641
      %643 = vperm.xlu0 %642, %v548
      %v644 = vpop.permute.xlu0 %643
      %v645 = vmul.f32 %v253, %v554
      %v646 = vmul.f32 %v254, %v560
      %v647 = vmul.f32 %v255, %v566
      %v648 = vmul.f32 %v256, %v572
      %v649 = vmul.f32 %v257, %v578
      %v650 = vmul.f32 %v258, %v584
      %v651 = vmul.f32 %v259, %v590
      %v652 = vmul.f32 %v260, %v596
      %v653 = vmul.f32 %v261, %v602
      %v654 = vmul.f32 %v262, %v608
      %v655 = vmul.f32 %v263, %v614
      %v656 = vmul.f32 %v264, %v620
      %v657 = vmul.f32 %v265, %v626
      %v658 = vmul.f32 %v266, %v632
      %v659 = vmul.f32 %v267, %v638
      %v660 = vmul.f32 %v268, %v644
      %661 = vst.msk [vmem:[%s252] sm:$0xff] %vm269, %v645
      %662 = vst.msk [vmem:[%s252 + $0x8] sm:$0xff] %vm269, %v646
      %663 = vst.msk [vmem:[%s252 + $0x10] sm:$0xff] %vm269, %v647
      %664 = vst.msk [vmem:[%s252 + $0x18] sm:$0xff] %vm269, %v648
      %665 = vst.msk [vmem:[%s252 + $0x20] sm:$0xff] %vm269, %v649
      %666 = vst.msk [vmem:[%s252 + $0x28] sm:$0xff] %vm269, %v650
      %667 = vst.msk [vmem:[%s252 + $0x30] sm:$0xff] %vm269, %v651
      %668 = vst.msk [vmem:[%s252 + $0x38] sm:$0xff] %vm269, %v652
      %669 = vst.msk [vmem:[%s252 + $0x40] sm:$0xff] %vm269, %v653
      %670 = vst.msk [vmem:[%s252 + $0x48] sm:$0xff] %vm269, %v654
      %671 = vst.msk [vmem:[%s252 + $0x50] sm:$0xff] %vm269, %v655
      %672 = vst.msk [vmem:[%s252 + $0x58] sm:$0xff] %vm269, %v656
      %673 = vst.msk [vmem:[%s252 + $0x60] sm:$0xff] %vm269, %v657
      %674 = vst.msk [vmem:[%s252 + $0x68] sm:$0xff] %vm269, %v658
      %675 = vst.msk [vmem:[%s252 + $0x70] sm:$0xff] %vm269, %v659
      %676 = vst.msk [vmem:[%s252 + $0x78] sm:$0xff] %vm269, %v660
      %p677 = scmp.lt.s32.totalorder %s18, 1
      %s678 = scalar_select %p677, %s18, 1
      %s679 = smul.addr %s678, 16
      %s680 = smul.addr %s679, 8
      %s681 = scalar_lea.vmem %s6, %s680
      // Predicated region
      $region45: #{tpu_custom_call.1} parent=43 // pred_check
        %p682 = pneg %p167
      $region46: #{tpu_custom_call.1} parent=43 // pred_check_branch
        %684 = sbr.rel (%p682) target = $region48
      $region47: #{tpu_custom_call.1} parent=43 // pred_region
        _
      $region48: #{tpu_custom_call.1} parent=43 // pred_fallthru
        _
    $region44: #{tpu_custom_call.1} parent=5 // pred_fallthru
      _
    %p685 = scmp.le.s32.totalorder 2, %s13
    // Predicated region
    $region49: #{tpu_custom_call.1} parent=5 // pred_check
      %p686 = pneg %p685
    $region50: #{tpu_custom_call.1} parent=5 // pred_check_branch
      %688 = sbr.rel (%p686) target = $region52
    $region51: #{tpu_custom_call.1} parent=5 // pred_region
      %s689 = ssub.s32 %s13, 2
      // Predicated region
      $region53: #{tpu_custom_call.1} parent=51 // pred_check
        %p690 = pneg %p173
      $region54: #{tpu_custom_call.1} parent=51 // pred_check_branch
        %692 = sbr.rel (%p690) target = $region56
      $region55: #{tpu_custom_call.1} parent=51 // pred_region
        %p693 = scmp.lt.s32.totalorder %s19, 1
        %s694 = scalar_select %p693, %s19, 1
        %s695 = smul.addr %s694, 16
        %s696 = smul.addr %s695, 8
        %s697 = scalar_lea.vmem %s6, %s696
      $region56: #{tpu_custom_call.1} parent=51 // pred_fallthru
        _
    $region52: #{tpu_custom_call.1} parent=5 // pred_fallthru
      _
  $region6: #{tpu_custom_call.1} parent=0 // loop_footer
    %s17 = sadd.s32 1, %s13
  $region7: #{tpu_custom_call.1} parent=0 // loop_footer_branch
    %12 = sbr.rel target = $region3
  $region8: #{tpu_custom_call.1} parent=0 // loop_exit
    _

</llo_original>
